<compile_context>
chip_gen: v7x
topology: tpu7x:2x2x1
jax: 0.10.0
libtpu: 0.0.40
codegen_flags: <defaults>
</compile_context>

<pallas_src>
import functools

import jax
import jax.numpy as jnp
from jax.experimental import pallas as pl
from jax.experimental.pallas import tpu as pltpu

dim_input = 5
dim_hidden = 6
dim_output = 2

# ----------------------------------------------------------------------------
# Flat SMEM parameter layout: for each layer, per output row: [W[o, :], b[o]].
# ----------------------------------------------------------------------------
_OFF1 = 0
_OFF2 = _OFF1 + dim_hidden * (dim_input + 1)      # 36
_OFF3 = _OFF2 + dim_output * (dim_hidden + 1)     # 50
_OFF4 = _OFF3 + dim_input * (dim_output + 1)      # 65
_N_PARAMS = _OFF4 + dim_output * (dim_input + 1)  # 77

_N_FMA = (dim_input * dim_hidden + dim_hidden * dim_output
          + dim_output * dim_input + dim_input * dim_output)      # 62 per element
_N_BIAS = dim_hidden + 2 * dim_output + dim_input                 # 15 per element
_N_TRANS = dim_hidden + 2 * dim_output + dim_input                # 15 per element


def _affine(p_ref, xs, n_out, n_in, off):
    """y[o] = sum_k W[o,k]*xs[k] + b[o], W/b read as SMEM scalars (no broadcasts).

    xs: list of n_in dense (R, 128) batch planes.  Returns n_out planes.
    """
    stride = n_in + 1
    outs = []
    for o in range(n_out):
        base = off + o * stride
        acc = xs[0] * p_ref[base]
        for k in range(1, n_in):
            acc = acc + xs[k] * p_ref[base + k]
        outs.append(acc + p_ref[base + n_in])
    return outs


def controller_kernel(p_ref, x_ref, o_ref):
    # x_ref: (dim_input, R, 128) f32 -> per-feature dense (R, 128) planes.
    xs = [x_ref[k] for k in range(dim_input)]
    h1 = [jnp.tanh(v) for v in _affine(p_ref, xs, dim_hidden, dim_input, _OFF1)]
    h2 = [jax.nn.sigmoid(v) for v in _affine(p_ref, h1, dim_output, dim_hidden, _OFF2)]
    h3 = [jnp.tanh(v) for v in _affine(p_ref, h2, dim_input, dim_output, _OFF3)]
    h4 = [jnp.tanh(v) for v in _affine(p_ref, h3, dim_output, dim_input, _OFF4)]
    for o in range(dim_output):
        o_ref[o] = h4[o]


def pack_params_flat(p):
    """Pack all weights/biases into one flat f32[_N_PARAMS] table (SMEM-resident)."""
    parts = []
    for w, b in ((p["w1"], p["b1"]), (p["w2"], p["b2"]),
                 (p["w3"], p["b3"]), (p["w4"], p["b4"])):
        wb = jnp.concatenate(
            [jnp.asarray(w, jnp.float32), jnp.asarray(b, jnp.float32)[:, None]],
            axis=1)                                    # (out, in + 1)
        parts.append(wb.reshape(-1))
    return jnp.concatenate(parts)


def _round_up(n, m):
    return ((n + m - 1) // m) * m


@functools.partial(jax.jit, static_argnames=("block_rows",))
def controller_forward(x, params, *, block_rows=None):
    """x: (batch, dim_input) f32 (PyTorch layout). Returns (batch, dim_output)."""
    squeeze = x.ndim == 1
    if squeeze:
        x = x[None, :]
    batch = x.shape[0]

    lanes = _round_up(batch, 128)
    planes = lanes // 128                              # rows of 128 batch lanes

    # --- batch-tile selection ------------------------------------------------
    # block_rows = plane-rows (of 128 lanes) per grid step.  Default ~2 MiB of
    # x per step; per-step VMEM footprint (double-buffered x/out blocks plus
    # materialized intermediates, ~17.5 KiB per plane-row) stays ~14 MiB,
    # comfortably inside the 32 MiB scoped-VMEM limit on v5e/v6e/v7x.
    if block_rows is None:
        block_rows = 816
    if planes <= 8 or (planes <= block_rows and planes < 64):
        # Single block covering the whole (padded) batch; last-two block dims
        # equal the full array dims so no (8,128) divisibility is required.
        steps, r = 1, planes
    else:
        # >=2 steps (v7x megacore can split the "parallel" batch axis); block
        # rows are a multiple of 8, and the tile is re-balanced so boundary
        # padding stays small even for awkward batch sizes.
        r_cap = max(8, _round_up(block_rows, 8))
        steps = max(2, pl.cdiv(planes, r_cap))
        r = _round_up(pl.cdiv(planes, steps), 8)
        steps = pl.cdiv(planes, r)
    planes_padded = steps * r
    lanes_padded = planes_padded * 128

    # Layout pass (transpose + pad + plane reshape) is fused by XLA under the
    # surrounding jit into a single pre-kernel copy.
    xt = jnp.asarray(x, jnp.float32).T                 # (dim_input, batch)
    xt = jnp.pad(xt, ((0, 0), (0, lanes_padded - batch)))
    xp = xt.reshape(dim_input, planes_padded, 128)     # dense feature planes

    p_flat = pack_params_flat(params)

    out_p = pl.pallas_call(
        controller_kernel,
        out_shape=jax.ShapeDtypeStruct((dim_output, planes_padded, 128), jnp.float32),
        grid=(steps,),
        in_specs=[
            # Tiny parameter table: whole array, SMEM-resident, read as scalars.
            pl.BlockSpec(memory_space=pltpu.MemorySpace.SMEM),
            # Streaming batch planes.
            pl.BlockSpec((dim_input, r, 128), lambda i: (0, i, 0)),
        ],
        out_specs=pl.BlockSpec((dim_output, r, 128), lambda i: (0, i, 0)),
        compiler_params=pltpu.CompilerParams(
            dimension_semantics=("parallel",),
            vmem_limit_bytes=32 * 1024 * 1024,
        ),
        cost_estimate=pl.CostEstimate(
            flops=lanes_padded * (2 * _N_FMA + _N_BIAS),
            transcendentals=lanes_padded * _N_TRANS,
            bytes_accessed=4 * (lanes_padded * (dim_input + dim_output) + _N_PARAMS),
        ),
    )(p_flat, xp)

    out = out_p.reshape(dim_output, lanes_padded)[:, :batch].T
    return out[0] if squeeze else out


# ----------------------------------------------------------------------------
# Init + pure-JAX reference (PyTorch nn.Linear convention).
# ----------------------------------------------------------------------------
def init_linear(key, fan_in, fan_out):
    kw, kb = jax.random.split(key)
    bound = 1.0 / jnp.sqrt(float(fan_in))
    w = jax.random.uniform(kw, (fan_out, fan_in), jnp.float32, -bound, bound)
    b = jax.random.uniform(kb, (fan_out,), jnp.float32, -bound, bound)
    return w, b


def init_params(key):
    k1, k2, k3, k4 = jax.random.split(key, 4)
    w1, b1 = init_linear(k1, dim_input, dim_hidden)
    w2, b2 = init_linear(k2, dim_hidden, dim_output)
    w3, b3 = init_linear(k3, dim_output, dim_input)
    w4, b4 = init_linear(k4, dim_input, dim_output)
    return {"w1": w1, "b1": b1, "w2": w2, "b2": b2,
            "w3": w3, "b3": b3, "w4": w4, "b4": b4}


def reference_forward(x, p):
    h1 = jnp.tanh(x @ p["w1"].T + p["b1"])
    h2 = jax.nn.sigmoid(h1 @ p["w2"].T + p["b2"])
    h3 = jnp.tanh(h2 @ p["w3"].T + p["b3"])
    return jnp.tanh(h3 @ p["w4"].T + p["b4"])


if __name__ == "__main__":
    key = jax.random.PRNGKey(0)
    k_params, k_x, k_x2 = jax.random.split(key, 3)

    params = init_params(k_params)

    # Small batch: single full-array block (planes=1).
    batch = 8
    x = jax.random.normal(k_x, (batch, dim_input), jnp.float32)
    out = controller_forward(x, params)
    jax.block_until_ready(out)
    ref = reference_forward(x, params)
    assert out.shape == (batch, dim_output)
    assert jnp.allclose(out, ref, atol=1e-5, rtol=1e-5)

    # Multi-step grid + padding path: 2000 rows -> 16 planes, 2 steps of 8.
    batch2 = 2000
    x2 = jax.random.normal(k_x2, (batch2, dim_input), jnp.float32)
    out2 = controller_forward(x2, params, block_rows=8)
    jax.block_until_ready(out2)
    ref2 = reference_forward(x2, params)
    assert out2.shape == (batch2, dim_output)
    assert jnp.allclose(out2, ref2, atol=1e-5, rtol=1e-5)

    print("KERNEL_OK")
</pallas_src>

<mosaic_0001>
module attributes {stable_mosaic.version = 11 : i64} {
  func.func @controller_kernel(%arg0: i32, %arg1: memref<77xf32, #tpu.memory_space<smem>>, %arg2: memref<5x1x128xf32, #tpu.memory_space<vmem>>, %arg3: memref<2x1x128xf32, #tpu.memory_space<vmem>>) attributes {dimension_semantics = [#tpu.dimension_semantics<parallel>], iteration_bounds = array<i64: 1>, scalar_prefetch = 0 : i64, scratch_operands = 0 : i64, tpu.core_type = #tpu.core_type<tc>, window_params = [{transform_indices = @transform_0, window_bounds = array<i64: 77>}, {transform_indices = @transform_1, window_bounds = array<i64: 5, 1, 128>}, {transform_indices = @transform_2, window_bounds = array<i64: 2, 1, 128>}]} {
    %c0 = arith.constant 0 : index
    %c0_0 = arith.constant 0 : index
    %c0_1 = arith.constant 0 : index
    %0 = vector.load %arg2[%c0, %c0_0, %c0_1] : memref<5x1x128xf32, #tpu.memory_space<vmem>>, vector<1x1x128xf32>
    %1 = vector.shape_cast %0 : vector<1x1x128xf32> to vector<1x128xf32>
    %c1 = arith.constant 1 : index
    %c0_2 = arith.constant 0 : index
    %c0_3 = arith.constant 0 : index
    %2 = vector.load %arg2[%c1, %c0_2, %c0_3] : memref<5x1x128xf32, #tpu.memory_space<vmem>>, vector<1x1x128xf32>
    %3 = vector.shape_cast %2 : vector<1x1x128xf32> to vector<1x128xf32>
    %c2 = arith.constant 2 : index
    %c0_4 = arith.constant 0 : index
    %c0_5 = arith.constant 0 : index
    %4 = vector.load %arg2[%c2, %c0_4, %c0_5] : memref<5x1x128xf32, #tpu.memory_space<vmem>>, vector<1x1x128xf32>
    %5 = vector.shape_cast %4 : vector<1x1x128xf32> to vector<1x128xf32>
    %c3 = arith.constant 3 : index
    %c0_6 = arith.constant 0 : index
    %c0_7 = arith.constant 0 : index
    %6 = vector.load %arg2[%c3, %c0_6, %c0_7] : memref<5x1x128xf32, #tpu.memory_space<vmem>>, vector<1x1x128xf32>
    %7 = vector.shape_cast %6 : vector<1x1x128xf32> to vector<1x128xf32>
    %c4 = arith.constant 4 : index
    %c0_8 = arith.constant 0 : index
    %c0_9 = arith.constant 0 : index
    %8 = vector.load %arg2[%c4, %c0_8, %c0_9] : memref<5x1x128xf32, #tpu.memory_space<vmem>>, vector<1x1x128xf32>
    %9 = vector.shape_cast %8 : vector<1x1x128xf32> to vector<1x128xf32>
    %c0_10 = arith.constant 0 : index
    %10 = memref.load %arg1[%c0_10] : memref<77xf32, #tpu.memory_space<smem>>
    %11 = vector.broadcast %10 : f32 to vector<1x128xf32>
    %12 = arith.mulf %1, %11 : vector<1x128xf32>
    %c1_11 = arith.constant 1 : index
    %13 = memref.load %arg1[%c1_11] : memref<77xf32, #tpu.memory_space<smem>>
    %14 = vector.broadcast %13 : f32 to vector<1x128xf32>
    %15 = arith.mulf %3, %14 : vector<1x128xf32>
    %16 = arith.addf %12, %15 : vector<1x128xf32>
    %c2_12 = arith.constant 2 : index
    %17 = memref.load %arg1[%c2_12] : memref<77xf32, #tpu.memory_space<smem>>
    %18 = vector.broadcast %17 : f32 to vector<1x128xf32>
    %19 = arith.mulf %5, %18 : vector<1x128xf32>
    %20 = arith.addf %16, %19 : vector<1x128xf32>
    %c3_13 = arith.constant 3 : index
    %21 = memref.load %arg1[%c3_13] : memref<77xf32, #tpu.memory_space<smem>>
    %22 = vector.broadcast %21 : f32 to vector<1x128xf32>
    %23 = arith.mulf %7, %22 : vector<1x128xf32>
    %24 = arith.addf %20, %23 : vector<1x128xf32>
    %c4_14 = arith.constant 4 : index
    %25 = memref.load %arg1[%c4_14] : memref<77xf32, #tpu.memory_space<smem>>
    %26 = vector.broadcast %25 : f32 to vector<1x128xf32>
    %27 = arith.mulf %9, %26 : vector<1x128xf32>
    %28 = arith.addf %24, %27 : vector<1x128xf32>
    %c5 = arith.constant 5 : index
    %29 = memref.load %arg1[%c5] : memref<77xf32, #tpu.memory_space<smem>>
    %30 = vector.broadcast %29 : f32 to vector<1x128xf32>
    %31 = arith.addf %28, %30 : vector<1x128xf32>
    %c6 = arith.constant 6 : index
    %32 = memref.load %arg1[%c6] : memref<77xf32, #tpu.memory_space<smem>>
    %33 = vector.broadcast %32 : f32 to vector<1x128xf32>
    %34 = arith.mulf %1, %33 : vector<1x128xf32>
    %c7 = arith.constant 7 : index
    %35 = memref.load %arg1[%c7] : memref<77xf32, #tpu.memory_space<smem>>
    %36 = vector.broadcast %35 : f32 to vector<1x128xf32>
    %37 = arith.mulf %3, %36 : vector<1x128xf32>
    %38 = arith.addf %34, %37 : vector<1x128xf32>
    %c8 = arith.constant 8 : index
    %39 = memref.load %arg1[%c8] : memref<77xf32, #tpu.memory_space<smem>>
    %40 = vector.broadcast %39 : f32 to vector<1x128xf32>
    %41 = arith.mulf %5, %40 : vector<1x128xf32>
    %42 = arith.addf %38, %41 : vector<1x128xf32>
    %c9 = arith.constant 9 : index
    %43 = memref.load %arg1[%c9] : memref<77xf32, #tpu.memory_space<smem>>
    %44 = vector.broadcast %43 : f32 to vector<1x128xf32>
    %45 = arith.mulf %7, %44 : vector<1x128xf32>
    %46 = arith.addf %42, %45 : vector<1x128xf32>
    %c10 = arith.constant 10 : index
    %47 = memref.load %arg1[%c10] : memref<77xf32, #tpu.memory_space<smem>>
    %48 = vector.broadcast %47 : f32 to vector<1x128xf32>
    %49 = arith.mulf %9, %48 : vector<1x128xf32>
    %50 = arith.addf %46, %49 : vector<1x128xf32>
    %c11 = arith.constant 11 : index
    %51 = memref.load %arg1[%c11] : memref<77xf32, #tpu.memory_space<smem>>
    %52 = vector.broadcast %51 : f32 to vector<1x128xf32>
    %53 = arith.addf %50, %52 : vector<1x128xf32>
    %c12 = arith.constant 12 : index
    %54 = memref.load %arg1[%c12] : memref<77xf32, #tpu.memory_space<smem>>
    %55 = vector.broadcast %54 : f32 to vector<1x128xf32>
    %56 = arith.mulf %1, %55 : vector<1x128xf32>
    %c13 = arith.constant 13 : index
    %57 = memref.load %arg1[%c13] : memref<77xf32, #tpu.memory_space<smem>>
    %58 = vector.broadcast %57 : f32 to vector<1x128xf32>
    %59 = arith.mulf %3, %58 : vector<1x128xf32>
    %60 = arith.addf %56, %59 : vector<1x128xf32>
    %c14 = arith.constant 14 : index
    %61 = memref.load %arg1[%c14] : memref<77xf32, #tpu.memory_space<smem>>
    %62 = vector.broadcast %61 : f32 to vector<1x128xf32>
    %63 = arith.mulf %5, %62 : vector<1x128xf32>
    %64 = arith.addf %60, %63 : vector<1x128xf32>
    %c15 = arith.constant 15 : index
    %65 = memref.load %arg1[%c15] : memref<77xf32, #tpu.memory_space<smem>>
    %66 = vector.broadcast %65 : f32 to vector<1x128xf32>
    %67 = arith.mulf %7, %66 : vector<1x128xf32>
    %68 = arith.addf %64, %67 : vector<1x128xf32>
    %c16 = arith.constant 16 : index
    %69 = memref.load %arg1[%c16] : memref<77xf32, #tpu.memory_space<smem>>
    %70 = vector.broadcast %69 : f32 to vector<1x128xf32>
    %71 = arith.mulf %9, %70 : vector<1x128xf32>
    %72 = arith.addf %68, %71 : vector<1x128xf32>
    %c17 = arith.constant 17 : index
    %73 = memref.load %arg1[%c17] : memref<77xf32, #tpu.memory_space<smem>>
    %74 = vector.broadcast %73 : f32 to vector<1x128xf32>
    %75 = arith.addf %72, %74 : vector<1x128xf32>
    %c18 = arith.constant 18 : index
    %76 = memref.load %arg1[%c18] : memref<77xf32, #tpu.memory_space<smem>>
    %77 = vector.broadcast %76 : f32 to vector<1x128xf32>
    %78 = arith.mulf %1, %77 : vector<1x128xf32>
    %c19 = arith.constant 19 : index
    %79 = memref.load %arg1[%c19] : memref<77xf32, #tpu.memory_space<smem>>
    %80 = vector.broadcast %79 : f32 to vector<1x128xf32>
    %81 = arith.mulf %3, %80 : vector<1x128xf32>
    %82 = arith.addf %78, %81 : vector<1x128xf32>
    %c20 = arith.constant 20 : index
    %83 = memref.load %arg1[%c20] : memref<77xf32, #tpu.memory_space<smem>>
    %84 = vector.broadcast %83 : f32 to vector<1x128xf32>
    %85 = arith.mulf %5, %84 : vector<1x128xf32>
    %86 = arith.addf %82, %85 : vector<1x128xf32>
    %c21 = arith.constant 21 : index
    %87 = memref.load %arg1[%c21] : memref<77xf32, #tpu.memory_space<smem>>
    %88 = vector.broadcast %87 : f32 to vector<1x128xf32>
    %89 = arith.mulf %7, %88 : vector<1x128xf32>
    %90 = arith.addf %86, %89 : vector<1x128xf32>
    %c22 = arith.constant 22 : index
    %91 = memref.load %arg1[%c22] : memref<77xf32, #tpu.memory_space<smem>>
    %92 = vector.broadcast %91 : f32 to vector<1x128xf32>
    %93 = arith.mulf %9, %92 : vector<1x128xf32>
    %94 = arith.addf %90, %93 : vector<1x128xf32>
    %c23 = arith.constant 23 : index
    %95 = memref.load %arg1[%c23] : memref<77xf32, #tpu.memory_space<smem>>
    %96 = vector.broadcast %95 : f32 to vector<1x128xf32>
    %97 = arith.addf %94, %96 : vector<1x128xf32>
    %c24 = arith.constant 24 : index
    %98 = memref.load %arg1[%c24] : memref<77xf32, #tpu.memory_space<smem>>
    %99 = vector.broadcast %98 : f32 to vector<1x128xf32>
    %100 = arith.mulf %1, %99 : vector<1x128xf32>
    %c25 = arith.constant 25 : index
    %101 = memref.load %arg1[%c25] : memref<77xf32, #tpu.memory_space<smem>>
    %102 = vector.broadcast %101 : f32 to vector<1x128xf32>
    %103 = arith.mulf %3, %102 : vector<1x128xf32>
    %104 = arith.addf %100, %103 : vector<1x128xf32>
    %c26 = arith.constant 26 : index
    %105 = memref.load %arg1[%c26] : memref<77xf32, #tpu.memory_space<smem>>
    %106 = vector.broadcast %105 : f32 to vector<1x128xf32>
    %107 = arith.mulf %5, %106 : vector<1x128xf32>
    %108 = arith.addf %104, %107 : vector<1x128xf32>
    %c27 = arith.constant 27 : index
    %109 = memref.load %arg1[%c27] : memref<77xf32, #tpu.memory_space<smem>>
    %110 = vector.broadcast %109 : f32 to vector<1x128xf32>
    %111 = arith.mulf %7, %110 : vector<1x128xf32>
    %112 = arith.addf %108, %111 : vector<1x128xf32>
    %c28 = arith.constant 28 : index
    %113 = memref.load %arg1[%c28] : memref<77xf32, #tpu.memory_space<smem>>
    %114 = vector.broadcast %113 : f32 to vector<1x128xf32>
    %115 = arith.mulf %9, %114 : vector<1x128xf32>
    %116 = arith.addf %112, %115 : vector<1x128xf32>
    %c29 = arith.constant 29 : index
    %117 = memref.load %arg1[%c29] : memref<77xf32, #tpu.memory_space<smem>>
    %118 = vector.broadcast %117 : f32 to vector<1x128xf32>
    %119 = arith.addf %116, %118 : vector<1x128xf32>
    %c30 = arith.constant 30 : index
    %120 = memref.load %arg1[%c30] : memref<77xf32, #tpu.memory_space<smem>>
    %121 = vector.broadcast %120 : f32 to vector<1x128xf32>
    %122 = arith.mulf %1, %121 : vector<1x128xf32>
    %c31 = arith.constant 31 : index
    %123 = memref.load %arg1[%c31] : memref<77xf32, #tpu.memory_space<smem>>
    %124 = vector.broadcast %123 : f32 to vector<1x128xf32>
    %125 = arith.mulf %3, %124 : vector<1x128xf32>
    %126 = arith.addf %122, %125 : vector<1x128xf32>
    %c32 = arith.constant 32 : index
    %127 = memref.load %arg1[%c32] : memref<77xf32, #tpu.memory_space<smem>>
    %128 = vector.broadcast %127 : f32 to vector<1x128xf32>
    %129 = arith.mulf %5, %128 : vector<1x128xf32>
    %130 = arith.addf %126, %129 : vector<1x128xf32>
    %c33 = arith.constant 33 : index
    %131 = memref.load %arg1[%c33] : memref<77xf32, #tpu.memory_space<smem>>
    %132 = vector.broadcast %131 : f32 to vector<1x128xf32>
    %133 = arith.mulf %7, %132 : vector<1x128xf32>
    %134 = arith.addf %130, %133 : vector<1x128xf32>
    %c34 = arith.constant 34 : index
    %135 = memref.load %arg1[%c34] : memref<77xf32, #tpu.memory_space<smem>>
    %136 = vector.broadcast %135 : f32 to vector<1x128xf32>
    %137 = arith.mulf %9, %136 : vector<1x128xf32>
    %138 = arith.addf %134, %137 : vector<1x128xf32>
    %c35 = arith.constant 35 : index
    %139 = memref.load %arg1[%c35] : memref<77xf32, #tpu.memory_space<smem>>
    %140 = vector.broadcast %139 : f32 to vector<1x128xf32>
    %141 = arith.addf %138, %140 : vector<1x128xf32>
    %142 = math.tanh %31 : vector<1x128xf32>
    %143 = math.tanh %53 : vector<1x128xf32>
    %144 = math.tanh %75 : vector<1x128xf32>
    %145 = math.tanh %97 : vector<1x128xf32>
    %146 = math.tanh %119 : vector<1x128xf32>
    %147 = math.tanh %141 : vector<1x128xf32>
    %c36 = arith.constant 36 : index
    %148 = memref.load %arg1[%c36] : memref<77xf32, #tpu.memory_space<smem>>
    %149 = vector.broadcast %148 : f32 to vector<1x128xf32>
    %150 = arith.mulf %142, %149 : vector<1x128xf32>
    %c37 = arith.constant 37 : index
    %151 = memref.load %arg1[%c37] : memref<77xf32, #tpu.memory_space<smem>>
    %152 = vector.broadcast %151 : f32 to vector<1x128xf32>
    %153 = arith.mulf %143, %152 : vector<1x128xf32>
    %154 = arith.addf %150, %153 : vector<1x128xf32>
    %c38 = arith.constant 38 : index
    %155 = memref.load %arg1[%c38] : memref<77xf32, #tpu.memory_space<smem>>
    %156 = vector.broadcast %155 : f32 to vector<1x128xf32>
    %157 = arith.mulf %144, %156 : vector<1x128xf32>
    %158 = arith.addf %154, %157 : vector<1x128xf32>
    %c39 = arith.constant 39 : index
    %159 = memref.load %arg1[%c39] : memref<77xf32, #tpu.memory_space<smem>>
    %160 = vector.broadcast %159 : f32 to vector<1x128xf32>
    %161 = arith.mulf %145, %160 : vector<1x128xf32>
    %162 = arith.addf %158, %161 : vector<1x128xf32>
    %c40 = arith.constant 40 : index
    %163 = memref.load %arg1[%c40] : memref<77xf32, #tpu.memory_space<smem>>
    %164 = vector.broadcast %163 : f32 to vector<1x128xf32>
    %165 = arith.mulf %146, %164 : vector<1x128xf32>
    %166 = arith.addf %162, %165 : vector<1x128xf32>
    %c41 = arith.constant 41 : index
    %167 = memref.load %arg1[%c41] : memref<77xf32, #tpu.memory_space<smem>>
    %168 = vector.broadcast %167 : f32 to vector<1x128xf32>
    %169 = arith.mulf %147, %168 : vector<1x128xf32>
    %170 = arith.addf %166, %169 : vector<1x128xf32>
    %c42 = arith.constant 42 : index
    %171 = memref.load %arg1[%c42] : memref<77xf32, #tpu.memory_space<smem>>
    %172 = vector.broadcast %171 : f32 to vector<1x128xf32>
    %173 = arith.addf %170, %172 : vector<1x128xf32>
    %c43 = arith.constant 43 : index
    %174 = memref.load %arg1[%c43] : memref<77xf32, #tpu.memory_space<smem>>
    %175 = vector.broadcast %174 : f32 to vector<1x128xf32>
    %176 = arith.mulf %142, %175 : vector<1x128xf32>
    %c44 = arith.constant 44 : index
    %177 = memref.load %arg1[%c44] : memref<77xf32, #tpu.memory_space<smem>>
    %178 = vector.broadcast %177 : f32 to vector<1x128xf32>
    %179 = arith.mulf %143, %178 : vector<1x128xf32>
    %180 = arith.addf %176, %179 : vector<1x128xf32>
    %c45 = arith.constant 45 : index
    %181 = memref.load %arg1[%c45] : memref<77xf32, #tpu.memory_space<smem>>
    %182 = vector.broadcast %181 : f32 to vector<1x128xf32>
    %183 = arith.mulf %144, %182 : vector<1x128xf32>
    %184 = arith.addf %180, %183 : vector<1x128xf32>
    %c46 = arith.constant 46 : index
    %185 = memref.load %arg1[%c46] : memref<77xf32, #tpu.memory_space<smem>>
    %186 = vector.broadcast %185 : f32 to vector<1x128xf32>
    %187 = arith.mulf %145, %186 : vector<1x128xf32>
    %188 = arith.addf %184, %187 : vector<1x128xf32>
    %c47 = arith.constant 47 : index
    %189 = memref.load %arg1[%c47] : memref<77xf32, #tpu.memory_space<smem>>
    %190 = vector.broadcast %189 : f32 to vector<1x128xf32>
    %191 = arith.mulf %146, %190 : vector<1x128xf32>
    %192 = arith.addf %188, %191 : vector<1x128xf32>
    %c48 = arith.constant 48 : index
    %193 = memref.load %arg1[%c48] : memref<77xf32, #tpu.memory_space<smem>>
    %194 = vector.broadcast %193 : f32 to vector<1x128xf32>
    %195 = arith.mulf %147, %194 : vector<1x128xf32>
    %196 = arith.addf %192, %195 : vector<1x128xf32>
    %c49 = arith.constant 49 : index
    %197 = memref.load %arg1[%c49] : memref<77xf32, #tpu.memory_space<smem>>
    %198 = vector.broadcast %197 : f32 to vector<1x128xf32>
    %199 = arith.addf %196, %198 : vector<1x128xf32>
    %200 = arith.negf %173 : vector<1x128xf32>
    %201 = math.exp %200 : vector<1x128xf32>
    %cst = arith.constant 1.000000e+00 : f32
    %202 = vector.broadcast %cst : f32 to vector<1x128xf32>
    %203 = arith.addf %202, %201 : vector<1x128xf32>
    %204 = arith.divf %202, %203 : vector<1x128xf32>
    %205 = arith.negf %199 : vector<1x128xf32>
    %206 = math.exp %205 : vector<1x128xf32>
    %cst_15 = arith.constant 1.000000e+00 : f32
    %207 = vector.broadcast %cst_15 : f32 to vector<1x128xf32>
    %208 = arith.addf %207, %206 : vector<1x128xf32>
    %209 = arith.divf %207, %208 : vector<1x128xf32>
    %c50 = arith.constant 50 : index
    %210 = memref.load %arg1[%c50] : memref<77xf32, #tpu.memory_space<smem>>
    %211 = vector.broadcast %210 : f32 to vector<1x128xf32>
    %212 = arith.mulf %204, %211 : vector<1x128xf32>
    %c51 = arith.constant 51 : index
    %213 = memref.load %arg1[%c51] : memref<77xf32, #tpu.memory_space<smem>>
    %214 = vector.broadcast %213 : f32 to vector<1x128xf32>
    %215 = arith.mulf %209, %214 : vector<1x128xf32>
    %216 = arith.addf %212, %215 : vector<1x128xf32>
    %c52 = arith.constant 52 : index
    %217 = memref.load %arg1[%c52] : memref<77xf32, #tpu.memory_space<smem>>
    %218 = vector.broadcast %217 : f32 to vector<1x128xf32>
    %219 = arith.addf %216, %218 : vector<1x128xf32>
    %c53 = arith.constant 53 : index
    %220 = memref.load %arg1[%c53] : memref<77xf32, #tpu.memory_space<smem>>
    %221 = vector.broadcast %220 : f32 to vector<1x128xf32>
    %222 = arith.mulf %204, %221 : vector<1x128xf32>
    %c54 = arith.constant 54 : index
    %223 = memref.load %arg1[%c54] : memref<77xf32, #tpu.memory_space<smem>>
    %224 = vector.broadcast %223 : f32 to vector<1x128xf32>
    %225 = arith.mulf %209, %224 : vector<1x128xf32>
    %226 = arith.addf %222, %225 : vector<1x128xf32>
    %c55 = arith.constant 55 : index
    %227 = memref.load %arg1[%c55] : memref<77xf32, #tpu.memory_space<smem>>
    %228 = vector.broadcast %227 : f32 to vector<1x128xf32>
    %229 = arith.addf %226, %228 : vector<1x128xf32>
    %c56 = arith.constant 56 : index
    %230 = memref.load %arg1[%c56] : memref<77xf32, #tpu.memory_space<smem>>
    %231 = vector.broadcast %230 : f32 to vector<1x128xf32>
    %232 = arith.mulf %204, %231 : vector<1x128xf32>
    %c57 = arith.constant 57 : index
    %233 = memref.load %arg1[%c57] : memref<77xf32, #tpu.memory_space<smem>>
    %234 = vector.broadcast %233 : f32 to vector<1x128xf32>
    %235 = arith.mulf %209, %234 : vector<1x128xf32>
    %236 = arith.addf %232, %235 : vector<1x128xf32>
    %c58 = arith.constant 58 : index
    %237 = memref.load %arg1[%c58] : memref<77xf32, #tpu.memory_space<smem>>
    %238 = vector.broadcast %237 : f32 to vector<1x128xf32>
    %239 = arith.addf %236, %238 : vector<1x128xf32>
    %c59 = arith.constant 59 : index
    %240 = memref.load %arg1[%c59] : memref<77xf32, #tpu.memory_space<smem>>
    %241 = vector.broadcast %240 : f32 to vector<1x128xf32>
    %242 = arith.mulf %204, %241 : vector<1x128xf32>
    %c60 = arith.constant 60 : index
    %243 = memref.load %arg1[%c60] : memref<77xf32, #tpu.memory_space<smem>>
    %244 = vector.broadcast %243 : f32 to vector<1x128xf32>
    %245 = arith.mulf %209, %244 : vector<1x128xf32>
    %246 = arith.addf %242, %245 : vector<1x128xf32>
    %c61 = arith.constant 61 : index
    %247 = memref.load %arg1[%c61] : memref<77xf32, #tpu.memory_space<smem>>
    %248 = vector.broadcast %247 : f32 to vector<1x128xf32>
    %249 = arith.addf %246, %248 : vector<1x128xf32>
    %c62 = arith.constant 62 : index
    %250 = memref.load %arg1[%c62] : memref<77xf32, #tpu.memory_space<smem>>
    %251 = vector.broadcast %250 : f32 to vector<1x128xf32>
    %252 = arith.mulf %204, %251 : vector<1x128xf32>
    %c63 = arith.constant 63 : index
    %253 = memref.load %arg1[%c63] : memref<77xf32, #tpu.memory_space<smem>>
    %254 = vector.broadcast %253 : f32 to vector<1x128xf32>
    %255 = arith.mulf %209, %254 : vector<1x128xf32>
    %256 = arith.addf %252, %255 : vector<1x128xf32>
    %c64 = arith.constant 64 : index
    %257 = memref.load %arg1[%c64] : memref<77xf32, #tpu.memory_space<smem>>
    %258 = vector.broadcast %257 : f32 to vector<1x128xf32>
    %259 = arith.addf %256, %258 : vector<1x128xf32>
    %260 = math.tanh %219 : vector<1x128xf32>
    %261 = math.tanh %229 : vector<1x128xf32>
    %262 = math.tanh %239 : vector<1x128xf32>
    %263 = math.tanh %249 : vector<1x128xf32>
    %264 = math.tanh %259 : vector<1x128xf32>
    %c65 = arith.constant 65 : index
    %265 = memref.load %arg1[%c65] : memref<77xf32, #tpu.memory_space<smem>>
    %266 = vector.broadcast %265 : f32 to vector<1x128xf32>
    %267 = arith.mulf %260, %266 : vector<1x128xf32>
    %c66 = arith.constant 66 : index
    %268 = memref.load %arg1[%c66] : memref<77xf32, #tpu.memory_space<smem>>
    %269 = vector.broadcast %268 : f32 to vector<1x128xf32>
    %270 = arith.mulf %261, %269 : vector<1x128xf32>
    %271 = arith.addf %267, %270 : vector<1x128xf32>
    %c67 = arith.constant 67 : index
    %272 = memref.load %arg1[%c67] : memref<77xf32, #tpu.memory_space<smem>>
    %273 = vector.broadcast %272 : f32 to vector<1x128xf32>
    %274 = arith.mulf %262, %273 : vector<1x128xf32>
    %275 = arith.addf %271, %274 : vector<1x128xf32>
    %c68 = arith.constant 68 : index
    %276 = memref.load %arg1[%c68] : memref<77xf32, #tpu.memory_space<smem>>
    %277 = vector.broadcast %276 : f32 to vector<1x128xf32>
    %278 = arith.mulf %263, %277 : vector<1x128xf32>
    %279 = arith.addf %275, %278 : vector<1x128xf32>
    %c69 = arith.constant 69 : index
    %280 = memref.load %arg1[%c69] : memref<77xf32, #tpu.memory_space<smem>>
    %281 = vector.broadcast %280 : f32 to vector<1x128xf32>
    %282 = arith.mulf %264, %281 : vector<1x128xf32>
    %283 = arith.addf %279, %282 : vector<1x128xf32>
    %c70 = arith.constant 70 : index
    %284 = memref.load %arg1[%c70] : memref<77xf32, #tpu.memory_space<smem>>
    %285 = vector.broadcast %284 : f32 to vector<1x128xf32>
    %286 = arith.addf %283, %285 : vector<1x128xf32>
    %c71 = arith.constant 71 : index
    %287 = memref.load %arg1[%c71] : memref<77xf32, #tpu.memory_space<smem>>
    %288 = vector.broadcast %287 : f32 to vector<1x128xf32>
    %289 = arith.mulf %260, %288 : vector<1x128xf32>
    %c72 = arith.constant 72 : index
    %290 = memref.load %arg1[%c72] : memref<77xf32, #tpu.memory_space<smem>>
    %291 = vector.broadcast %290 : f32 to vector<1x128xf32>
    %292 = arith.mulf %261, %291 : vector<1x128xf32>
    %293 = arith.addf %289, %292 : vector<1x128xf32>
    %c73 = arith.constant 73 : index
    %294 = memref.load %arg1[%c73] : memref<77xf32, #tpu.memory_space<smem>>
    %295 = vector.broadcast %294 : f32 to vector<1x128xf32>
    %296 = arith.mulf %262, %295 : vector<1x128xf32>
    %297 = arith.addf %293, %296 : vector<1x128xf32>
    %c74 = arith.constant 74 : index
    %298 = memref.load %arg1[%c74] : memref<77xf32, #tpu.memory_space<smem>>
    %299 = vector.broadcast %298 : f32 to vector<1x128xf32>
    %300 = arith.mulf %263, %299 : vector<1x128xf32>
    %301 = arith.addf %297, %300 : vector<1x128xf32>
    %c75 = arith.constant 75 : index
    %302 = memref.load %arg1[%c75] : memref<77xf32, #tpu.memory_space<smem>>
    %303 = vector.broadcast %302 : f32 to vector<1x128xf32>
    %304 = arith.mulf %264, %303 : vector<1x128xf32>
    %305 = arith.addf %301, %304 : vector<1x128xf32>
    %c76 = arith.constant 76 : index
    %306 = memref.load %arg1[%c76] : memref<77xf32, #tpu.memory_space<smem>>
    %307 = vector.broadcast %306 : f32 to vector<1x128xf32>
    %308 = arith.addf %305, %307 : vector<1x128xf32>
    %309 = math.tanh %286 : vector<1x128xf32>
    %310 = math.tanh %308 : vector<1x128xf32>
    %c0_16 = arith.constant 0 : index
    %c0_17 = arith.constant 0 : index
    %c0_18 = arith.constant 0 : index
    %311 = vector.load %arg3[%c0_16, %c0_17, %c0_18] : memref<2x1x128xf32, #tpu.memory_space<vmem>>, vector<1x1x128xf32>
    %312 = vector.shape_cast %311 : vector<1x1x128xf32> to vector<1x128xf32>
    %313 = vector.shape_cast %309 : vector<1x128xf32> to vector<1x1x128xf32>
    tpu.vector_store %arg3[%c0_16, %c0_17, %c0_18], %313 {strides = array<i32>} : memref<2x1x128xf32, #tpu.memory_space<vmem>>, vector<1x1x128xf32>,
    %c1_19 = arith.constant 1 : index
    %c0_20 = arith.constant 0 : index
    %c0_21 = arith.constant 0 : index
    %314 = vector.load %arg3[%c1_19, %c0_20, %c0_21] : memref<2x1x128xf32, #tpu.memory_space<vmem>>, vector<1x1x128xf32>
    %315 = vector.shape_cast %314 : vector<1x1x128xf32> to vector<1x128xf32>
    %316 = vector.shape_cast %310 : vector<1x128xf32> to vector<1x1x128xf32>
    tpu.vector_store %arg3[%c1_19, %c0_20, %c0_21], %316 {strides = array<i32>} : memref<2x1x128xf32, #tpu.memory_space<vmem>>, vector<1x1x128xf32>,
    return
  }
  func.func @transform_0(%arg0: i32) -> i32 {
    %c0_i32 = arith.constant 0 : i32
    %c0_i32_0 = arith.constant 0 : i32
    return %c0_i32 : i32
  }
  func.func @transform_1(%arg0: i32) -> (i32, i32, i32) {
    %c0_i32 = arith.constant 0 : i32
    %c0_i32_0 = arith.constant 0 : i32
    %c0_i32_1 = arith.constant 0 : i32
    return %c0_i32, %arg0, %c0_i32_0 : i32, i32, i32
  }
  func.func @transform_2(%arg0: i32) -> (i32, i32, i32) {
    %c0_i32 = arith.constant 0 : i32
    %c0_i32_0 = arith.constant 0 : i32
    %c0_i32_1 = arith.constant 0 : i32
    return %c0_i32, %arg0, %c0_i32_0 : i32, i32, i32
  }
}

</mosaic_0001>

<llo_original>
// kernel: controller_forward.1
$region0: #{controller_forward.1}
  #allocation0 [shape = 'u32[]', space=smem, size = 0x4, offset = 0x4, fixed_abs, tag = 'smem constant byte address 0x4 - core index']
  #allocation1 [shape = 'u32[144,128]{1,0:T(1,128)}', space=vmem, size = 0x12000, scoped, tag = 'internal scratch']
  %s0 = inlined_call_operand.vmem [shape: f32[77], index: 0, kind: input, shape index: {}]
  %s1 = inlined_call_operand.vmem [shape: f32[5,1,128], index: 1, kind: input, shape index: {}]
  %s2 = inlined_call_operand.vmem [shape: f32[2,1,128], index: 2, kind: output, shape index: {}]
  %s3 = sld [smem:[#allocation0]]
  $region22: #{controller_forward.1} parent=0
    _
  %s5 = ssub.s32 1, %s3
  %s6 = scalar_select 0, %s5, %s3
  $region1: #{controller_forward.1} parent=0
    #allocation2 [shape = 'u8[512]{0}', space=smem, size = 0x200, scoped, tag = 'input window, operand 0, single buffered']
    #allocation3 [shape = 's32[1]{0}', space=sflag, size = 0x4, scoped, tag = 'scoped memory for controller_forward.1']
    %7 = vsyncpa [#allocation3], 0
    // Predicated region
    $region2: #{controller_forward.1} parent=1 // pred_check
      _
    $region3: #{controller_forward.1} parent=1 // pred_check_branch
      %9 = sbr.rel (0) target = $region5
    $region4: #{controller_forward.1} parent=1 // pred_region
      %s11 = ssub.s32 16, 16
      %12 = vsyncadd [#allocation3], %s11
      %s14 = sshll.u32 %s0, 4
      %s15 = int_to_ptr.vmem [resolvable:$true] %s14
      %17 = dma.vmem_to_smem %s15, 16, [#allocation2], [#allocation3]
    $region5: #{controller_forward.1} parent=1 // pred_fallthru
      _
    // Predicated region
    $region6: #{controller_forward.1} parent=1 // pred_check
      _
    $region7: #{controller_forward.1} parent=1 // pred_check_branch
      %19 = sbr.rel (0) target = $region9
    $region8: #{controller_forward.1} parent=1 // pred_region
      _
    $region9: #{controller_forward.1} parent=1 // pred_fallthru
      _
    // Predicated region
    $region10: #{controller_forward.1} parent=1 // pred_check
      _
    $region11: #{controller_forward.1} parent=1 // pred_check_branch
      %21 = sbr.rel (0) target = $region13
    $region12: #{controller_forward.1} parent=1 // pred_region
      %22 = dma.done [#allocation3], 16
    $region13: #{controller_forward.1} parent=1 // pred_fallthru
      _
    %23 = sfence
    %v24 = vld [vmem:[%s1] sm:$0x1]
    %s25 = scalar_lea.vmem %s1, 1
    %v26 = vld [vmem:[%s25] sm:$0x1]
    %s27 = scalar_lea.vmem %s1, 2
    %v28 = vld [vmem:[%s27] sm:$0x1]
    %s29 = scalar_lea.vmem %s1, 3
    %v30 = vld [vmem:[%s29] sm:$0x1]
    %s31 = scalar_lea.vmem %s1, 4
    %v32 = vld [vmem:[%s31] sm:$0x1]
    %s33 = sld [smem:[#allocation2]]
    %v34 = vstv %s33
    %v35 = vmul.f32 %v24, %v34
    %s36 = sld [smem:[#allocation2 + $0x1]]
    %v37 = vstv %s36
    %v38 = vmul.f32 %v26, %v37
    %v39 = vadd.f32 %v35, %v38
    %s40 = sld [smem:[#allocation2 + $0x2]]
    %v41 = vstv %s40
    %v42 = vmul.f32 %v28, %v41
    %v43 = vadd.f32 %v39, %v42
    %s44 = sld [smem:[#allocation2 + $0x3]]
    %v45 = vstv %s44
    %v46 = vmul.f32 %v30, %v45
    %v47 = vadd.f32 %v43, %v46
    %s48 = sld [smem:[#allocation2 + $0x4]]
    %v49 = vstv %s48
    %v50 = vmul.f32 %v32, %v49
    %v51 = vadd.f32 %v47, %v50
    %s52 = sld [smem:[#allocation2 + $0x5]]
    %v53 = vstv %s52
    %v54 = vadd.f32 %v51, %v53
    %s55 = sld [smem:[#allocation2 + $0x6]]
    %v56 = vstv %s55
    %v57 = vmul.f32 %v24, %v56
    %s58 = sld [smem:[#allocation2 + $0x7]]
    %v59 = vstv %s58
    %v60 = vmul.f32 %v26, %v59
    %v61 = vadd.f32 %v57, %v60
    %s62 = sld [smem:[#allocation2 + $0x8]]
    %v63 = vstv %s62
    %v64 = vmul.f32 %v28, %v63
    %v65 = vadd.f32 %v61, %v64
    %s66 = sld [smem:[#allocation2 + $0x9]]
    %v67 = vstv %s66
    %v68 = vmul.f32 %v30, %v67
    %v69 = vadd.f32 %v65, %v68
    %s70 = sld [smem:[#allocation2 + $0xa]]
    %v71 = vstv %s70
    %v72 = vmul.f32 %v32, %v71
    %v73 = vadd.f32 %v69, %v72
    %s74 = sld [smem:[#allocation2 + $0xb]]
    %v75 = vstv %s74
    %v76 = vadd.f32 %v73, %v75
    %s77 = sld [smem:[#allocation2 + $0xc]]
    %v78 = vstv %s77
    %v79 = vmul.f32 %v24, %v78
    %s80 = sld [smem:[#allocation2 + $0xd]]
    %v81 = vstv %s80
    %v82 = vmul.f32 %v26, %v81
    %v83 = vadd.f32 %v79, %v82
    %s84 = sld [smem:[#allocation2 + $0xe]]
    %v85 = vstv %s84
    %v86 = vmul.f32 %v28, %v85
    %v87 = vadd.f32 %v83, %v86
    %s88 = sld [smem:[#allocation2 + $0xf]]
    %v89 = vstv %s88
    %v90 = vmul.f32 %v30, %v89
    %v91 = vadd.f32 %v87, %v90
    %s92 = sld [smem:[#allocation2 + $0x10]]
    %v93 = vstv %s92
    %v94 = vmul.f32 %v32, %v93
    %v95 = vadd.f32 %v91, %v94
    %s96 = sld [smem:[#allocation2 + $0x11]]
    %v97 = vstv %s96
    %v98 = vadd.f32 %v95, %v97
    %s99 = sld [smem:[#allocation2 + $0x12]]
    %v100 = vstv %s99
    %v101 = vmul.f32 %v24, %v100
    %s102 = sld [smem:[#allocation2 + $0x13]]
    %v103 = vstv %s102
    %v104 = vmul.f32 %v26, %v103
    %v105 = vadd.f32 %v101, %v104
    %s106 = sld [smem:[#allocation2 + $0x14]]
    %v107 = vstv %s106
    %v108 = vmul.f32 %v28, %v107
    %v109 = vadd.f32 %v105, %v108
    %s110 = sld [smem:[#allocation2 + $0x15]]
    %v111 = vstv %s110
    %v112 = vmul.f32 %v30, %v111
    %v113 = vadd.f32 %v109, %v112
    %s114 = sld [smem:[#allocation2 + $0x16]]
    %v115 = vstv %s114
    %v116 = vmul.f32 %v32, %v115
    %v117 = vadd.f32 %v113, %v116
    %s118 = sld [smem:[#allocation2 + $0x17]]
    %v119 = vstv %s118
    %v120 = vadd.f32 %v117, %v119
    %s121 = sld [smem:[#allocation2 + $0x18]]
    %v122 = vstv %s121
    %v123 = vmul.f32 %v24, %v122
    %s124 = sld [smem:[#allocation2 + $0x19]]
    %v125 = vstv %s124
    %v126 = vmul.f32 %v26, %v125
    %v127 = vadd.f32 %v123, %v126
    %s128 = sld [smem:[#allocation2 + $0x1a]]
    %v129 = vstv %s128
    %v130 = vmul.f32 %v28, %v129
    %v131 = vadd.f32 %v127, %v130
    %s132 = sld [smem:[#allocation2 + $0x1b]]
    %v133 = vstv %s132
    %v134 = vmul.f32 %v30, %v133
    %v135 = vadd.f32 %v131, %v134
    %s136 = sld [smem:[#allocation2 + $0x1c]]
    %v137 = vstv %s136
    %v138 = vmul.f32 %v32, %v137
    %v139 = vadd.f32 %v135, %v138
    %s140 = sld [smem:[#allocation2 + $0x1d]]
    %v141 = vstv %s140
    %v142 = vadd.f32 %v139, %v141
    %s143 = sld [smem:[#allocation2 + $0x1e]]
    %v144 = vstv %s143
    %v145 = vmul.f32 %v24, %v144
    %s146 = sld [smem:[#allocation2 + $0x1f]]
    %v147 = vstv %s146
    %v148 = vmul.f32 %v26, %v147
    %v149 = vadd.f32 %v145, %v148
    %s150 = sld [smem:[#allocation2 + $0x20]]
    %v151 = vstv %s150
    %v152 = vmul.f32 %v28, %v151
    %v153 = vadd.f32 %v149, %v152
    %s154 = sld [smem:[#allocation2 + $0x21]]
    %v155 = vstv %s154
    %v156 = vmul.f32 %v30, %v155
    %v157 = vadd.f32 %v153, %v156
    %s158 = sld [smem:[#allocation2 + $0x22]]
    %v159 = vstv %s158
    %v160 = vmul.f32 %v32, %v159
    %v161 = vadd.f32 %v157, %v160
    %s162 = sld [smem:[#allocation2 + $0x23]]
    %v163 = vstv %s162
    %v164 = vadd.f32 %v161, %v163
    %v165 = vtanh.pop %v54
    %v166 = vtanh.pop %v76
    %v167 = vtanh.pop %v98
    %v168 = vtanh.pop %v120
    %v169 = vtanh.pop %v142
    %v170 = vtanh.pop %v164
    %s171 = sld [smem:[#allocation2 + $0x24]]
    %v172 = vstv %s171
    %v173 = vmul.f32 %v165, %v172
    %s174 = sld [smem:[#allocation2 + $0x25]]
    %v175 = vstv %s174
    %v176 = vmul.f32 %v166, %v175
    %v177 = vadd.f32 %v173, %v176
    %s178 = sld [smem:[#allocation2 + $0x26]]
    %v179 = vstv %s178
    %v180 = vmul.f32 %v167, %v179
    %v181 = vadd.f32 %v177, %v180
    %s182 = sld [smem:[#allocation2 + $0x27]]
    %v183 = vstv %s182
    %v184 = vmul.f32 %v168, %v183
    %v185 = vadd.f32 %v181, %v184
    %s186 = sld [smem:[#allocation2 + $0x28]]
    %v187 = vstv %s186
    %v188 = vmul.f32 %v169, %v187
    %v189 = vadd.f32 %v185, %v188
    %s190 = sld [smem:[#allocation2 + $0x29]]
    %v191 = vstv %s190
    %v192 = vmul.f32 %v170, %v191
    %v193 = vadd.f32 %v189, %v192
    %s194 = sld [smem:[#allocation2 + $0x2a]]
    %v195 = vstv %s194
    %v196 = vadd.f32 %v193, %v195
    %s197 = sld [smem:[#allocation2 + $0x2b]]
    %v198 = vstv %s197
    %v199 = vmul.f32 %v165, %v198
    %s200 = sld [smem:[#allocation2 + $0x2c]]
    %v201 = vstv %s200
    %v202 = vmul.f32 %v166, %v201
    %v203 = vadd.f32 %v199, %v202
    %s204 = sld [smem:[#allocation2 + $0x2d]]
    %v205 = vstv %s204
    %v206 = vmul.f32 %v167, %v205
    %v207 = vadd.f32 %v203, %v206
    %s208 = sld [smem:[#allocation2 + $0x2e]]
    %v209 = vstv %s208
    %v210 = vmul.f32 %v168, %v209
    %v211 = vadd.f32 %v207, %v210
    %s212 = sld [smem:[#allocation2 + $0x2f]]
    %v213 = vstv %s212
    %v214 = vmul.f32 %v169, %v213
    %v215 = vadd.f32 %v211, %v214
    %s216 = sld [smem:[#allocation2 + $0x30]]
    %v217 = vstv %s216
    %v218 = vmul.f32 %v170, %v217
    %v219 = vadd.f32 %v215, %v218
    %s220 = sld [smem:[#allocation2 + $0x31]]
    %v221 = vstv %s220
    %v222 = vadd.f32 %v219, %v221
    %v223 = vxor.u32 %v196, 2147483648
    %v224 = vmul.f32 %v223, 1.442695
    %v225 = vpow.pop %v224
    %v226 = vadd.f32 %v225, 1.0
    %v227 = vrcp.pop %v226
    %v228 = vmul.f32 1.0, %v227
    %v229 = vxor.u32 %v222, 2147483648
    %v230 = vmul.f32 %v229, 1.442695
    %v231 = vpow.pop %v230
    %v232 = vadd.f32 %v231, 1.0
    %v233 = vrcp.pop %v232
    %v234 = vmul.f32 1.0, %v233
    %s235 = sld [smem:[#allocation2 + $0x32]]
    %v236 = vstv %s235
    %v237 = vmul.f32 %v228, %v236
    %s238 = sld [smem:[#allocation2 + $0x33]]
    %v239 = vstv %s238
    %v240 = vmul.f32 %v234, %v239
    %v241 = vadd.f32 %v237, %v240
    %s242 = sld [smem:[#allocation2 + $0x34]]
    %v243 = vstv %s242
    %v244 = vadd.f32 %v241, %v243
    %s245 = sld [smem:[#allocation2 + $0x35]]
    %v246 = vstv %s245
    %v247 = vmul.f32 %v228, %v246
    %s248 = sld [smem:[#allocation2 + $0x36]]
    %v249 = vstv %s248
    %v250 = vmul.f32 %v234, %v249
    %v251 = vadd.f32 %v247, %v250
    %s252 = sld [smem:[#allocation2 + $0x37]]
    %v253 = vstv %s252
    %v254 = vadd.f32 %v251, %v253
    %s255 = sld [smem:[#allocation2 + $0x38]]
    %v256 = vstv %s255
    %v257 = vmul.f32 %v228, %v256
    %s258 = sld [smem:[#allocation2 + $0x39]]
    %v259 = vstv %s258
    %v260 = vmul.f32 %v234, %v259
    %v261 = vadd.f32 %v257, %v260
    %s262 = sld [smem:[#allocation2 + $0x3a]]
    %v263 = vstv %s262
    %v264 = vadd.f32 %v261, %v263
    %s265 = sld [smem:[#allocation2 + $0x3b]]
    %v266 = vstv %s265
    %v267 = vmul.f32 %v228, %v266
    %s268 = sld [smem:[#allocation2 + $0x3c]]
    %v269 = vstv %s268
    %v270 = vmul.f32 %v234, %v269
    %v271 = vadd.f32 %v267, %v270
    %s272 = sld [smem:[#allocation2 + $0x3d]]
    %v273 = vstv %s272
    %v274 = vadd.f32 %v271, %v273
    %s275 = sld [smem:[#allocation2 + $0x3e]]
    %v276 = vstv %s275
    %v277 = vmul.f32 %v228, %v276
    %s278 = sld [smem:[#allocation2 + $0x3f]]
    %v279 = vstv %s278
    %v280 = vmul.f32 %v234, %v279
    %v281 = vadd.f32 %v277, %v280
    %s282 = sld [smem:[#allocation2 + $0x40]]
    %v283 = vstv %s282
    %v284 = vadd.f32 %v281, %v283
    %v285 = vtanh.pop %v244
    %v286 = vtanh.pop %v254
    %v287 = vtanh.pop %v264
    %v288 = vtanh.pop %v274
    %v289 = vtanh.pop %v284
    %s290 = sld [smem:[#allocation2 + $0x41]]
    %v291 = vstv %s290
    %v292 = vmul.f32 %v285, %v291
    %s293 = sld [smem:[#allocation2 + $0x42]]
    %v294 = vstv %s293
    %v295 = vmul.f32 %v286, %v294
    %v296 = vadd.f32 %v292, %v295
    %s297 = sld [smem:[#allocation2 + $0x43]]
    %v298 = vstv %s297
    %v299 = vmul.f32 %v287, %v298
    %v300 = vadd.f32 %v296, %v299
    %s301 = sld [smem:[#allocation2 + $0x44]]
    %v302 = vstv %s301
    %v303 = vmul.f32 %v288, %v302
    %v304 = vadd.f32 %v300, %v303
    %s305 = sld [smem:[#allocation2 + $0x45]]
    %v306 = vstv %s305
    %v307 = vmul.f32 %v289, %v306
    %v308 = vadd.f32 %v304, %v307
    %s309 = sld [smem:[#allocation2 + $0x46]]
    %v310 = vstv %s309
    %v311 = vadd.f32 %v308, %v310
    %s312 = sld [smem:[#allocation2 + $0x47]]
    %v313 = vstv %s312
    %v314 = vmul.f32 %v285, %v313
    %s315 = sld [smem:[#allocation2 + $0x48]]
    %v316 = vstv %s315
    %v317 = vmul.f32 %v286, %v316
    %v318 = vadd.f32 %v314, %v317
    %s319 = sld [smem:[#allocation2 + $0x49]]
    %v320 = vstv %s319
    %v321 = vmul.f32 %v287, %v320
    %v322 = vadd.f32 %v318, %v321
    %s323 = sld [smem:[#allocation2 + $0x4a]]
    %v324 = vstv %s323
    %v325 = vmul.f32 %v288, %v324
    %v326 = vadd.f32 %v322, %v325
    %s327 = sld [smem:[#allocation2 + $0x4b]]
    %v328 = vstv %s327
    %v329 = vmul.f32 %v289, %v328
    %v330 = vadd.f32 %v326, %v329
    %s331 = sld [smem:[#allocation2 + $0x4c]]
    %v332 = vstv %s331
    %v333 = vadd.f32 %v330, %v332
    %v334 = vtanh.pop %v311
    %v335 = vtanh.pop %v333
    %336 = vst [vmem:[%s2] sm:$0x1] %v334
    %s337 = scalar_lea.vmem %s2, 1
    %338 = vst [vmem:[%s337] sm:$0x1] %v335
    // Predicated region
    $region14: #{controller_forward.1} parent=1 // pred_check
      _
    $region15: #{controller_forward.1} parent=1 // pred_check_branch
      %340 = sbr.rel (0) target = $region17
    $region16: #{controller_forward.1} parent=1 // pred_region
      _
    $region17: #{controller_forward.1} parent=1 // pred_fallthru
      _
    // Predicated region
    $region18: #{controller_forward.1} parent=1 // pred_check
      _
    $region19: #{controller_forward.1} parent=1 // pred_check_branch
      %342 = sbr.rel (0) target = $region21
    $region20: #{controller_forward.1} parent=1 // pred_region
      _
    $region21: #{controller_forward.1} parent=1 // pred_fallthru
      _
    %343 = vsyncpa [#allocation3], 1

</llo_original>
